<compile_context>
chip_gen: v7x
topology: tpu7x:2x2x1
jax: 0.10.0
libtpu: 0.0.40
codegen_flags: <defaults>
</compile_context>

<pallas_src>
import functools

import jax
import jax.numpy as jnp
from jax import lax
from jax.experimental import pallas as pl
from jax.experimental.pallas import tpu as pltpu


# ----------------------------- conv3d (Pallas) -----------------------------

_KMAX = 256          # max MXU contraction depth per staged matmul


def _conv_kernel(xg_ref, w_ref, b_ref, o_ref, stg_ref, *, taps, cin, so,
                 kc_taps, act, scale):
    """One sample.
    xg_ref : (s^3*Cin, Stot) bf16 phase-stacked, flattened, guard-padded input.
    w_ref  : (Cout, ntaps*Cin) bf16 weights (tap-major, channel-minor).
    b_ref  : (Cout, 1) f32 per-sample bias (code channels folded in here).
    o_ref  : (Cout, So) output (lane-dense spatial axis).
    stg_ref: (kc_taps*cin, So) bf16 staging scratch for the deep-K matmul."""
    xg = xg_ref[...]
    w = w_ref[...]
    ntaps = len(taps)
    acc = None
    for g0 in range(0, ntaps, kc_taps):          # static python unroll
        g = min(kc_taps, ntaps - g0)
        for j in range(g):
            ch0, off = taps[g0 + j]
            stg_ref[j * cin:(j + 1) * cin, :] = xg[ch0:ch0 + cin, off:off + so]
        y = jnp.dot(w[:, g0 * cin:(g0 + g) * cin], stg_ref[0:g * cin, :],
                    preferred_element_type=jnp.float32)
        acc = y if acc is None else acc + y
    acc = acc + b_ref[...]                       # f32 epilogue
    if scale is not None:
        acc = acc * scale
    if act == "leaky":
        acc = jnp.where(acc >= 0, acc, 0.2 * acc)
    elif act == "tanh":
        acc = jnp.tanh(acc)
    o_ref[...] = acc.astype(o_ref.dtype)


def conv3d(x, w, b, stride=1, padding=1, act="none",
           out_dtype=jnp.bfloat16, out_scale=None):
    """x: (N, Cin, D, H, W); w: (Cout, Cin, kd, kh, kw); b: (Cout,) or (N, Cout)."""
    N, Cin, D, H, W = x.shape
    Cout, Cin_w, kd, kh, kw = w.shape
    assert Cin_w == Cin
    s, p = stride, padding

    def rup(v, m):
        return ((v + m - 1) // m) * m

    Do = (D + 2 * p - kd) // s + 1
    Ho = (H + 2 * p - kh) // s + 1
    Wo = (W + 2 * p - kw) // s + 1
    Hp, Wp = rup(H + 2 * p, s), rup(W + 2 * p, s)
    Hph, Wph = Hp // s, Wp // s

    # Per-tap (channel offset into phase-stacked input, flat lane offset).
    taps = []
    for kz in range(kd):
        for ky in range(kh):
            for kx in range(kw):
                bz, az = kz % s, kz // s
                by, ay = ky % s, ky // s
                bx, ax = kx % s, kx // s
                phase = (bz * s + by) * s + bx
                taps.append((phase * Cin, az * Hph * Wph + ay * Wph + ax))
    max_off = max(off for _, off in taps)

    Dph = rup(D + 2 * p, s) // s
    guard = -(-max_off // (Hph * Wph))           # extra trailing slices per phase
    Dph_tot = Dph + guard
    Dp_tot = Dph_tot * s
    So = Dph * Hph * Wph                         # output flat length
    Stot = Dph_tot * Hph * Wph                   # input flat length per channel

    # Single pad (conv pad + stride round-up + flat guard) fused with the cast.
    xp = jnp.pad(x, ((0, 0), (0, 0),
                     (p, Dp_tot - D - p),
                     (p, Hp - H - p),
                     (p, Wp - W - p))).astype(jnp.bfloat16)
    # Polyphase split for the stride (identity for stride=1), then flatten.
    xp = xp.reshape(N, Cin, Dph_tot, s, Hph, s, Wph, s)
    xp = jnp.transpose(xp, (0, 3, 5, 7, 1, 2, 4, 6))
    xg = xp.reshape(N, s * s * s * Cin, Stot)

    ntaps = kd * kh * kw
    wmat = jnp.transpose(w, (0, 2, 3, 4, 1)).reshape(Cout, ntaps * Cin)
    wmat = wmat.astype(jnp.bfloat16)
    if b.ndim == 1:
        b = jnp.broadcast_to(b.reshape(1, Cout), (N, Cout))
    bmat = b.astype(jnp.float32).reshape(N, Cout, 1)

    kc_taps = min(ntaps, max(1, _KMAX // Cin))
    n_stage = kc_taps * Cin

    out_elt = jnp.dtype(out_dtype).itemsize
    need = (2 * (s * s * s * Cin * Stot * 2 + Cout * So * out_elt + Cout * 4)
            + Cout * ntaps * Cin * 2 + n_stage * So * 2)
    vmem_limit = int(min(48 * 2 ** 20, max(32 * 2 ** 20, 2 * need)))

    kernel = functools.partial(_conv_kernel, taps=tuple(taps), cin=Cin, so=So,
                               kc_taps=kc_taps, act=act, scale=out_scale)
    out = pl.pallas_call(
        kernel,
        out_shape=jax.ShapeDtypeStruct((N, Cout, So), out_dtype),
        grid=(N,),
        in_specs=[
            pl.BlockSpec((None, s * s * s * Cin, Stot), lambda n: (n, 0, 0)),
            pl.BlockSpec((Cout, ntaps * Cin), lambda n: (0, 0)),
            pl.BlockSpec((None, Cout, 1), lambda n: (n, 0, 0)),
        ],
        out_specs=pl.BlockSpec((None, Cout, So), lambda n: (n, 0, 0)),
        scratch_shapes=[pltpu.VMEM((n_stage, So), jnp.bfloat16)],
        compiler_params=pltpu.CompilerParams(
            dimension_semantics=("parallel",),
            vmem_limit_bytes=vmem_limit),
    )(xg, wmat, bmat)

    # TODO(synk): halo'd spatial-tile grid axis (manual DMA) for production
    # volumes so per-sample blocks fit v7x's 64 MiB VMEM and both TCs get work.
    out = out.reshape(N, Cout, Dph, Hph, Wph)
    return out[:, :, :Do, :Ho, :Wo]


# ------------------------ tiled Pallas loss reductions ------------------------

_TILE_SUB, _TILE_LANE = 8, 128
_TILE = _TILE_SUB * _TILE_LANE          # one (8,128) f32 tile = 4 KiB
_TR8_MAX = 256                          # tiles per grid step (1 MiB / input)


def _pack(x2d, pad_value):
    """(G, n) -> (G, R8, 8, 128) f32 padded with pad_value to whole tiles and
    to a multiple of the per-step tile count (no pathologically small blocks)."""
    x2d = x2d.astype(jnp.float32)
    G, n = x2d.shape
    r8 = -(-n // _TILE)
    tr8 = r8 if r8 <= _TR8_MAX else _TR8_MAX
    r8p = -(-r8 // tr8) * tr8
    npad = r8p * _TILE - n
    if npad:
        x2d = jnp.pad(x2d, ((0, 0), (0, npad)), constant_values=pad_value)
    return x2d.reshape(G, r8p, _TILE_SUB, _TILE_LANE)


def _reduce_call(kernel, inputs):
    """inputs: list of (G, R8, 8, 128) f32.  Returns per-group sums, shape (G,).
    Each grid step only adds into an (8,128) VMEM partial (VPU); the cross-lane
    reduction runs once on the last tile."""
    G, R8 = inputs[0].shape[:2]
    tr8 = R8 if R8 <= _TR8_MAX else _TR8_MAX
    out = pl.pallas_call(
        kernel,
        out_shape=jax.ShapeDtypeStruct((G, 1, 1), jnp.float32),
        grid=(G, R8 // tr8),
        in_specs=[pl.BlockSpec((None, tr8, _TILE_SUB, _TILE_LANE),
                               lambda g, t: (g, t, 0, 0)) for _ in inputs],
        out_specs=pl.BlockSpec((None, 1, 1), lambda g, t: (g, 0, 0)),
        scratch_shapes=[pltpu.VMEM((_TILE_SUB, _TILE_LANE), jnp.float32)],
        compiler_params=pltpu.CompilerParams(
            dimension_semantics=("parallel", "arbitrary")),
    )(*inputs)
    return out[:, 0, 0]


def _acc_init(acc_ref):
    @pl.when(pl.program_id(1) == 0)
    def _():
        acc_ref[...] = jnp.zeros_like(acc_ref)


def _acc_final(o_ref, acc_ref):
    @pl.when(pl.program_id(1) == pl.num_programs(1) - 1)
    def _():
        o_ref[...] = jnp.zeros_like(o_ref) + jnp.sum(acc_ref[...])


def _l1_kernel(a_ref, b_ref, o_ref, acc_ref):
    _acc_init(acc_ref)
    acc_ref[...] += jnp.sum(jnp.abs(a_ref[...] - b_ref[...]), axis=0)
    _acc_final(o_ref, acc_ref)


def _sqerr_kernel(p_ref, o_ref, acc_ref, *, target):
    # lsgan target baked in; pad value == target so padding contributes 0.
    _acc_init(acc_ref)
    d = p_ref[...] - target
    acc_ref[...] += jnp.sum(d * d, axis=0)
    _acc_final(o_ref, acc_ref)


def _sumsq_kernel(x_ref, o_ref, acc_ref):
    _acc_init(acc_ref)
    x = x_ref[...]
    acc_ref[...] += jnp.sum(x * x, axis=0)
    _acc_final(o_ref, acc_ref)


def _ssim_kernel(mx_ref, my_ref, mxx_ref, myy_ref, mxy_ref, o_ref, acc_ref):
    # data_range=1.0, K1=0.01, K2=0.03 (pytorch_msssim defaults).
    C1 = 0.01 ** 2
    C2 = 0.03 ** 2
    _acc_init(acc_ref)
    mx = mx_ref[...]
    my = my_ref[...]
    vx = mxx_ref[...] - mx * mx
    vy = myy_ref[...] - my * my
    vxy = mxy_ref[...] - mx * my
    num = (2.0 * mx * my + C1) * (2.0 * vxy + C2)
    den = (mx * mx + my * my + C1) * (vx + vy + C2)
    acc_ref[...] += jnp.sum(num / den, axis=0)
    _acc_final(o_ref, acc_ref)


def _ncc_kernel(si_ref, sj_ref, sii_ref, sjj_ref, sij_ref, o_ref, acc_ref, *, win):
    eps = 1e-5
    _acc_init(acc_ref)
    sI = si_ref[...]
    sJ = sj_ref[...]
    uI = sI / win
    uJ = sJ / win
    cross = sij_ref[...] - uJ * sI - uI * sJ + uI * uJ * win
    ivar = sii_ref[...] - 2.0 * uI * sI + uI * uI * win
    jvar = sjj_ref[...] - 2.0 * uJ * sJ + uJ * uJ * win
    acc_ref[...] += jnp.sum(cross * cross / (ivar * jvar + eps), axis=0)
    _acc_final(o_ref, acc_ref)


# ------------------------------ loss wrappers ------------------------------

def l1_loss(a, b):
    n = a.size
    s = _reduce_call(_l1_kernel, [_pack(a.reshape(1, -1), 0.0),
                                  _pack(b.reshape(1, -1), 0.0)])
    return s[0] / n


def gan_loss_lsgan(pred, target_is_real):
    t = 1.0 if target_is_real else 0.0
    s = _reduce_call(functools.partial(_sqerr_kernel, target=t),
                     [_pack(pred.reshape(1, -1), t)])
    return s[0] / pred.size


def gradient_loss(flow):
    """flow: (N, 3, D, H, W).  Shifted differences in XLA (elementwise); the
    three squared-sum reductions run as 3 grid groups in ONE Pallas call."""
    dz = flow[:, :, 1:] - flow[:, :, :-1]
    dy = flow[:, :, :, 1:] - flow[:, :, :, :-1]
    dx = flow[:, :, :, :, 1:] - flow[:, :, :, :, :-1]
    flats = [d.reshape(-1) for d in (dz, dy, dx)]
    counts = jnp.array([f.size for f in flats], jnp.float32)
    nmax = max(f.size for f in flats)
    x2d = jnp.stack([jnp.pad(f, (0, nmax - f.size)) for f in flats])
    s = _reduce_call(_sumsq_kernel, [_pack(x2d, 0.0)])
    return jnp.mean(s / counts)


def _gauss1d(size, sigma):
    half = (size - 1) / 2.0
    coords = jnp.arange(size, dtype=jnp.float32) - half
    g = jnp.exp(-(coords ** 2) / (2.0 * sigma ** 2))
    return g / jnp.sum(g)


def _sep_gauss(v, win, sigma=1.5):
    """v: (B, 1, D, H, W).  Separable VALID 3-D Gaussian (3 x 1-D passes)."""
    g = _gauss1d(win, sigma)
    dn = ("NCDHW", "OIDHW", "NCDHW")
    for shape in ((1, 1, win, 1, 1), (1, 1, 1, win, 1), (1, 1, 1, 1, win)):
        v = lax.conv_general_dilated(v, g.reshape(shape), (1, 1, 1), "VALID",
                                     dimension_numbers=dn)
    return v


def ssim3d(x, y, win_size=7):
    """x, y: (N, 1, D, H, W) in [0, 1].  SSIM(win=7, data_range=1,
    nonnegative_ssim=True): relu of the per-sample spatial mean, batch mean.
    The 5 Gaussian passes share one batched separable filter."""
    N = x.shape[0]
    X = x[:, 0].astype(jnp.float32)
    Y = y[:, 0].astype(jnp.float32)
    stacked = jnp.stack([X, Y, X * X, Y * Y, X * Y], 0).reshape(5 * N, 1, *X.shape[1:])
    filt = _sep_gauss(stacked, win_size).reshape(5, N, -1)
    nwin = filt.shape[-1]
    C2 = 0.03 ** 2
    # Pad values chosen so padded windows contribute exactly 0 to the sum.
    pad_vals = (0.0, 0.0, 0.0, 0.0, -0.5 * C2)
    ins = [_pack(filt[i], pad_vals[i]) for i in range(5)]
    s = _reduce_call(_ssim_kernel, ins)                 # per-sample sums, (N,)
    return jnp.mean(jnp.maximum(s / nwin, 0.0))


def _sep_box_sum(v, win):
    """v: (B, D, H, W).  Separable SAME (zero-padded) box window sum."""
    for wd in ((1, win, 1, 1), (1, 1, win, 1), (1, 1, 1, win)):
        v = lax.reduce_window(v, 0.0, lax.add, wd, (1, 1, 1, 1), "SAME")
    return v


def ncc_loss(i, j, win=7):
    """Local windowed NCC (VoxelMorph-style); 5 box sums fused & separable."""
    I = i[:, 0].astype(jnp.float32)
    J = j[:, 0].astype(jnp.float32)
    stacked = jnp.stack([I, J, I * I, J * J, I * J], 0).reshape(-1, *I.shape[1:])
    sums = _sep_box_sum(stacked, win).reshape(5, -1)
    n = sums.shape[-1]
    ins = [_pack(sums[k][None], 0.0) for k in range(5)]
    s = _reduce_call(functools.partial(_ncc_kernel, win=float(win ** 3)), ins)
    return -(s[0] / n)


# --------------------------------- warping ---------------------------------

def warp3d(vol, flow):
    """Trilinear warp.  vol: (N, C, D, H, W), flow: (N, 3, D, H, W) voxel
    displacements (dz, dy, dx).  img + label warped in one call (shared gathers).
    TODO(synk): data-dependent trilinear gather (grid_sample) stays in plain
    JAX; PyTorch grid_sample uses normalized [-1,1] coords (not matched here)."""
    N, C, D, H, W = vol.shape
    v = jnp.transpose(vol, (0, 2, 3, 4, 1)).astype(jnp.float32)
    f = jnp.transpose(flow, (0, 2, 3, 4, 1)).astype(jnp.float32)
    zz, yy, xx = jnp.meshgrid(jnp.arange(D, dtype=jnp.float32),
                              jnp.arange(H, dtype=jnp.float32),
                              jnp.arange(W, dtype=jnp.float32), indexing="ij")
    pos = jnp.stack([zz, yy, xx], axis=-1)[None] + f
    z = jnp.clip(pos[..., 0], 0.0, D - 1.0)
    y = jnp.clip(pos[..., 1], 0.0, H - 1.0)
    x = jnp.clip(pos[..., 2], 0.0, W - 1.0)
    z0 = jnp.floor(z).astype(jnp.int32)
    y0 = jnp.floor(y).astype(jnp.int32)
    x0 = jnp.floor(x).astype(jnp.int32)
    z1 = jnp.minimum(z0 + 1, D - 1)
    y1 = jnp.minimum(y0 + 1, H - 1)
    x1 = jnp.minimum(x0 + 1, W - 1)
    wz = (z - z0.astype(jnp.float32))[..., None]
    wy = (y - y0.astype(jnp.float32))[..., None]
    wx = (x - x0.astype(jnp.float32))[..., None]

    def per_sample(vs, z0s, z1s, y0s, y1s, x0s, x1s, wzs, wys, wxs):
        c000 = vs[z0s, y0s, x0s]; c001 = vs[z0s, y0s, x1s]
        c010 = vs[z0s, y1s, x0s]; c011 = vs[z0s, y1s, x1s]
        c100 = vs[z1s, y0s, x0s]; c101 = vs[z1s, y0s, x1s]
        c110 = vs[z1s, y1s, x0s]; c111 = vs[z1s, y1s, x1s]
        c00 = c000 * (1 - wxs) + c001 * wxs
        c01 = c010 * (1 - wxs) + c011 * wxs
        c10 = c100 * (1 - wxs) + c101 * wxs
        c11 = c110 * (1 - wxs) + c111 * wxs
        c0 = c00 * (1 - wys) + c01 * wys
        c1 = c10 * (1 - wys) + c11 * wys
        return c0 * (1 - wzs) + c1 * wzs

    out = jax.vmap(per_sample)(v, z0, z1, y0, y1, x0, x1, wz, wy, wx)
    return jnp.transpose(out, (0, 4, 1, 2, 3))


# ------------------------------- parameters -------------------------------

def _init_conv(key, cin, cout, k=3):
    w = 0.05 * jax.random.normal(key, (cout, cin, k, k, k), jnp.float32)
    b = jnp.zeros((cout,), jnp.float32)
    return w, b


class Opt:
    nz = 32
    flow_code_dim = 16
    style_code_dim = 16
    naf = 8
    ndf = 8
    gan_type = "lsgan"
    lambda_grad = 1.0
    lambda_struct = 1.0
    lambda_ssim = 1.0
    lambda_app = 1.0


class GANModelPallas:
    def __init__(self, opt, key):
        self.opt = opt
        ks = jax.random.split(key, 12)
        # Encoder E(nz)
        self.e_c1 = _init_conv(ks[0], 1, 8)
        self.e_c2 = _init_conv(ks[1], 8, 16)
        # mu / logvar heads fused into one tiny (16, 2*nz) linear (plain jnp).
        self.e_lin_w = 0.05 * jax.random.normal(ks[2], (16, 2 * opt.nz), jnp.float32)
        self.e_lin_b = jnp.zeros((2 * opt.nz,), jnp.float32)
        # StyleGenerator G(flow_code_dim, style_code_dim, naf).  The spatially
        # constant flow/style codes are injected as a per-sample conv bias
        # (FiLM-style) instead of broadcast channels -> Cin drops 18->2, 17->1.
        self.g_f1 = _init_conv(ks[3], 2, opt.naf)
        self.g_f1_code = 0.05 * jax.random.normal(ks[4], (opt.flow_code_dim, opt.naf), jnp.float32)
        self.g_f2 = _init_conv(ks[5], opt.naf, 3)
        self.g_s1 = _init_conv(ks[6], 1, opt.naf)
        self.g_s1_code = 0.05 * jax.random.normal(ks[7], (opt.style_code_dim, opt.naf), jnp.float32)
        self.g_s2 = _init_conv(ks[8], opt.naf, 1)
        # Discriminator D(ndf)
        self.d_c1 = _init_conv(ks[9], 1, opt.ndf)
        self.d_c2 = _init_conv(ks[10], opt.ndf, 2 * opt.ndf)
        self.d_c3 = _init_conv(ks[11], 2 * opt.ndf, 1)

    # ---- sub-networks ----
    def E(self, x):
        h = conv3d(x, *self.e_c1, stride=2, padding=1, act="leaky")
        h = conv3d(h, *self.e_c2, stride=2, padding=1, act="leaky")
        h = jnp.mean(h.astype(jnp.float32), axis=(2, 3, 4))        # (N, 16)
        stats = h @ self.e_lin_w + self.e_lin_b                    # tiny: plain jnp
        return stats[:, :self.opt.nz], stats[:, self.opt.nz:]

    def G(self, base_img, base_label, z):
        opt = self.opt
        fc = z[:, :opt.flow_code_dim]
        sc = z[:, opt.flow_code_dim:opt.flow_code_dim + opt.style_code_dim]
        wf1, bf1 = self.g_f1
        h = conv3d(jnp.concatenate([base_img, base_label], axis=1), wf1,
                   bf1[None] + fc @ self.g_f1_code,                # code -> bias
                   stride=1, padding=1, act="leaky")
        flow_field = conv3d(h, *self.g_f2, stride=1, padding=1, act="none",
                            out_dtype=jnp.float32, out_scale=0.1)  # 0.1 fused
        warped = warp3d(jnp.concatenate([base_img, base_label], axis=1), flow_field)
        wrapped_img, wrapped_label = warped[:, :1], warped[:, 1:]
        ws1, bs1 = self.g_s1
        s = conv3d(wrapped_img, ws1,
                   bs1[None] + sc @ self.g_s1_code,                # code -> bias
                   stride=1, padding=1, act="leaky")
        predicted_img = conv3d(s, *self.g_s2, stride=1, padding=1, act="tanh",
                               out_dtype=jnp.float32)
        return predicted_img, wrapped_img, wrapped_label, flow_field

    def D(self, x):
        h = conv3d(x, *self.d_c1, stride=2, padding=1, act="leaky")
        h = conv3d(h, *self.d_c2, stride=2, padding=1, act="leaky")
        return conv3d(h, *self.d_c3, stride=1, padding=1, act="none",
                      out_dtype=jnp.float32)

    def reparameterize(self, mu, logvar, eps):
        return eps * jnp.exp(0.5 * logvar) + mu                    # tiny: plain jnp

    def discriminate(self, real_img, fake_img):
        return self.D(real_img), self.D(fake_img)

    # ---- forward (mirrors GANModel.forward) ----
    def forward(self, base_img, base_label, real_img, mode, rng):
        opt = self.opt
        z_mu, z_log_var = self.E(real_img)
        eps = jax.random.normal(rng, z_mu.shape, jnp.float32)
        z = self.reparameterize(z_mu, z_log_var, eps)
        predicted_img, wrapped_img, wrapped_label, flow_field = self.G(
            base_img, base_label, z)

        if mode == "generator":
            losses = {}
            losses["G_loss"] = gan_loss_lsgan(self.D(predicted_img), True)
            losses["G_flow_reg_loss"] = opt.lambda_grad * gradient_loss(flow_field)
            losses["G_struct_loss"] = opt.lambda_struct * ncc_loss(wrapped_img, real_img)
            s_w = ssim3d((wrapped_img + 1.0) / 2.0, (real_img + 1.0) / 2.0)
            losses["G_struct_loss_ssim"] = -2.0 * opt.lambda_ssim * jnp.log(s_w + 1e-6)
            losses["G_app_loss_l1"] = opt.lambda_app * l1_loss(predicted_img, real_img)
            s_p = ssim3d((predicted_img + 1.0) / 2.0, (real_img + 1.0) / 2.0)
            losses["G_app_loss_ssim"] = -opt.lambda_ssim * jnp.log(s_p + 1e-6)
            return losses, predicted_img, wrapped_label
        else:
            # forward-only: no detach of predicted_img needed (no grads here)
            real_pred, fake_pred = self.discriminate(real_img, predicted_img)
            loss = gan_loss_lsgan(real_pred, True) + gan_loss_lsgan(fake_pred, False)
            return {"D_loss": loss}


# ----------------------------------- main -----------------------------------

if __name__ == "__main__":
    key = jax.random.PRNGKey(0)
    k_param, k_b, k_l, k_r, k_eps = jax.random.split(key, 5)
    opt = Opt()
    model = GANModelPallas(opt, k_param)

    N, D, H, W = 2, 8, 8, 8
    base_img = jax.random.uniform(k_b, (N, 1, D, H, W), jnp.float32, minval=-1.0, maxval=1.0)
    base_label = (jax.random.uniform(k_l, (N, 1, D, H, W), jnp.float32) > 0.5).astype(jnp.float32)
    real_img = jax.random.uniform(k_r, (N, 1, D, H, W), jnp.float32, minval=-1.0, maxval=1.0)

    gen_losses, predicted_img, wrapped_label = model.forward(
        base_img, base_label, real_img, "generator", k_eps)
    disc_losses = model.forward(base_img, base_label, real_img, "discriminator", k_eps)

    jax.block_until_ready((gen_losses, predicted_img, wrapped_label, disc_losses))
    print("KERNEL_OK")
</pallas_src>

<mosaic_0001>
module attributes {stable_mosaic.version = 11 : i64} {
  func.func @_conv_kernel(%arg0: i32, %arg1: memref<1x8x175xbf16, #tpu.memory_space<vmem>>, %arg2: memref<8x27xbf16, #tpu.memory_space<vmem>>, %arg3: memref<1x8x1xf32, #tpu.memory_space<vmem>>, %arg4: memref<1x8x125xbf16, #tpu.memory_space<vmem>>, %arg5: memref<27x125xbf16, #tpu.memory_space<vmem>>) attributes {dimension_semantics = [#tpu.dimension_semantics<parallel>], iteration_bounds = array<i64: 2>, scalar_prefetch = 0 : i64, scratch_operands = 1 : i64, tpu.core_type = #tpu.core_type<tc>, window_params = [{transform_indices = @transform_0, window_bounds = array<i64: 1, 8, 175>}, {pipeline_mode = #tpu.pipeline_mode<synchronous>, transform_indices = @transform_1, window_bounds = array<i64: 8, 27>}, {transform_indices = @transform_2, window_bounds = array<i64: 1, 8, 1>}, {transform_indices = @transform_3, window_bounds = array<i64: 1, 8, 125>}]} {
    %c0 = arith.constant 0 : index
    %c0_0 = arith.constant 0 : index
    %c0_1 = arith.constant 0 : index
    %0 = vector.load %arg1[%c0, %c0_0, %c0_1] : memref<1x8x175xbf16, #tpu.memory_space<vmem>>, vector<1x8x175xbf16>
    %1 = vector.shape_cast %0 : vector<1x8x175xbf16> to vector<8x175xbf16>
    %c0_2 = arith.constant 0 : index
    %c0_3 = arith.constant 0 : index
    %2 = vector.load %arg2[%c0_2, %c0_3] : memref<8x27xbf16, #tpu.memory_space<vmem>>, vector<8x27xbf16>
    %3 = vector.extract_strided_slice %1 {offsets = [0, 0], sizes = [1, 125], strides = [1, 1]} : vector<8x175xbf16> to vector<1x125xbf16>
    %c0_4 = arith.constant 0 : index
    %c0_5 = arith.constant 0 : index
    %4 = vector.load %arg5[%c0_4, %c0_5] : memref<27x125xbf16, #tpu.memory_space<vmem>>, vector<1x125xbf16>
    tpu.vector_store %arg5[%c0_4, %c0_5], %3 {strides = array<i32>} : memref<27x125xbf16, #tpu.memory_space<vmem>>, vector<1x125xbf16>,
    %5 = vector.extract_strided_slice %1 {offsets = [1, 0], sizes = [1, 125], strides = [1, 1]} : vector<8x175xbf16> to vector<1x125xbf16>
    %c1 = arith.constant 1 : index
    %c0_6 = arith.constant 0 : index
    %6 = vector.load %arg5[%c1, %c0_6] : memref<27x125xbf16, #tpu.memory_space<vmem>>, vector<1x125xbf16>
    tpu.vector_store %arg5[%c1, %c0_6], %5 {strides = array<i32>} : memref<27x125xbf16, #tpu.memory_space<vmem>>, vector<1x125xbf16>,
    %7 = vector.extract_strided_slice %1 {offsets = [0, 1], sizes = [1, 125], strides = [1, 1]} : vector<8x175xbf16> to vector<1x125xbf16>
    %c2 = arith.constant 2 : index
    %c0_7 = arith.constant 0 : index
    %8 = vector.load %arg5[%c2, %c0_7] : memref<27x125xbf16, #tpu.memory_space<vmem>>, vector<1x125xbf16>
    tpu.vector_store %arg5[%c2, %c0_7], %7 {strides = array<i32>} : memref<27x125xbf16, #tpu.memory_space<vmem>>, vector<1x125xbf16>,
    %9 = vector.extract_strided_slice %1 {offsets = [2, 0], sizes = [1, 125], strides = [1, 1]} : vector<8x175xbf16> to vector<1x125xbf16>
    %c3 = arith.constant 3 : index
    %c0_8 = arith.constant 0 : index
    %10 = vector.load %arg5[%c3, %c0_8] : memref<27x125xbf16, #tpu.memory_space<vmem>>, vector<1x125xbf16>
    tpu.vector_store %arg5[%c3, %c0_8], %9 {strides = array<i32>} : memref<27x125xbf16, #tpu.memory_space<vmem>>, vector<1x125xbf16>,
    %11 = vector.extract_strided_slice %1 {offsets = [3, 0], sizes = [1, 125], strides = [1, 1]} : vector<8x175xbf16> to vector<1x125xbf16>
    %c4 = arith.constant 4 : index
    %c0_9 = arith.constant 0 : index
    %12 = vector.load %arg5[%c4, %c0_9] : memref<27x125xbf16, #tpu.memory_space<vmem>>, vector<1x125xbf16>
    tpu.vector_store %arg5[%c4, %c0_9], %11 {strides = array<i32>} : memref<27x125xbf16, #tpu.memory_space<vmem>>, vector<1x125xbf16>,
    %13 = vector.extract_strided_slice %1 {offsets = [2, 1], sizes = [1, 125], strides = [1, 1]} : vector<8x175xbf16> to vector<1x125xbf16>
    %c5 = arith.constant 5 : index
    %c0_10 = arith.constant 0 : index
    %14 = vector.load %arg5[%c5, %c0_10] : memref<27x125xbf16, #tpu.memory_space<vmem>>, vector<1x125xbf16>
    tpu.vector_store %arg5[%c5, %c0_10], %13 {strides = array<i32>} : memref<27x125xbf16, #tpu.memory_space<vmem>>, vector<1x125xbf16>,
    %15 = vector.extract_strided_slice %1 {offsets = [0, 5], sizes = [1, 125], strides = [1, 1]} : vector<8x175xbf16> to vector<1x125xbf16>
    %c6 = arith.constant 6 : index
    %c0_11 = arith.constant 0 : index
    %16 = vector.load %arg5[%c6, %c0_11] : memref<27x125xbf16, #tpu.memory_space<vmem>>, vector<1x125xbf16>
    tpu.vector_store %arg5[%c6, %c0_11], %15 {strides = array<i32>} : memref<27x125xbf16, #tpu.memory_space<vmem>>, vector<1x125xbf16>,
    %17 = vector.extract_strided_slice %1 {offsets = [1, 5], sizes = [1, 125], strides = [1, 1]} : vector<8x175xbf16> to vector<1x125xbf16>
    %c7 = arith.constant 7 : index
    %c0_12 = arith.constant 0 : index
    %18 = vector.load %arg5[%c7, %c0_12] : memref<27x125xbf16, #tpu.memory_space<vmem>>, vector<1x125xbf16>
    tpu.vector_store %arg5[%c7, %c0_12], %17 {strides = array<i32>} : memref<27x125xbf16, #tpu.memory_space<vmem>>, vector<1x125xbf16>,
    %19 = vector.extract_strided_slice %1 {offsets = [0, 6], sizes = [1, 125], strides = [1, 1]} : vector<8x175xbf16> to vector<1x125xbf16>
    %c8 = arith.constant 8 : index
    %c0_13 = arith.constant 0 : index
    %20 = vector.load %arg5[%c8, %c0_13] : memref<27x125xbf16, #tpu.memory_space<vmem>>, vector<1x125xbf16>
    tpu.vector_store %arg5[%c8, %c0_13], %19 {strides = array<i32>} : memref<27x125xbf16, #tpu.memory_space<vmem>>, vector<1x125xbf16>,
    %21 = vector.extract_strided_slice %1 {offsets = [4, 0], sizes = [1, 125], strides = [1, 1]} : vector<8x175xbf16> to vector<1x125xbf16>
    %c9 = arith.constant 9 : index
    %c0_14 = arith.constant 0 : index
    %22 = vector.load %arg5[%c9, %c0_14] : memref<27x125xbf16, #tpu.memory_space<vmem>>, vector<1x125xbf16>
    tpu.vector_store %arg5[%c9, %c0_14], %21 {strides = array<i32>} : memref<27x125xbf16, #tpu.memory_space<vmem>>, vector<1x125xbf16>,
    %23 = vector.extract_strided_slice %1 {offsets = [5, 0], sizes = [1, 125], strides = [1, 1]} : vector<8x175xbf16> to vector<1x125xbf16>
    %c10 = arith.constant 10 : index
    %c0_15 = arith.constant 0 : index
    %24 = vector.load %arg5[%c10, %c0_15] : memref<27x125xbf16, #tpu.memory_space<vmem>>, vector<1x125xbf16>
    tpu.vector_store %arg5[%c10, %c0_15], %23 {strides = array<i32>} : memref<27x125xbf16, #tpu.memory_space<vmem>>, vector<1x125xbf16>,
    %25 = vector.extract_strided_slice %1 {offsets = [4, 1], sizes = [1, 125], strides = [1, 1]} : vector<8x175xbf16> to vector<1x125xbf16>
    %c11 = arith.constant 11 : index
    %c0_16 = arith.constant 0 : index
    %26 = vector.load %arg5[%c11, %c0_16] : memref<27x125xbf16, #tpu.memory_space<vmem>>, vector<1x125xbf16>
    tpu.vector_store %arg5[%c11, %c0_16], %25 {strides = array<i32>} : memref<27x125xbf16, #tpu.memory_space<vmem>>, vector<1x125xbf16>,
    %27 = vector.extract_strided_slice %1 {offsets = [6, 0], sizes = [1, 125], strides = [1, 1]} : vector<8x175xbf16> to vector<1x125xbf16>
    %c12 = arith.constant 12 : index
    %c0_17 = arith.constant 0 : index
    %28 = vector.load %arg5[%c12, %c0_17] : memref<27x125xbf16, #tpu.memory_space<vmem>>, vector<1x125xbf16>
    tpu.vector_store %arg5[%c12, %c0_17], %27 {strides = array<i32>} : memref<27x125xbf16, #tpu.memory_space<vmem>>, vector<1x125xbf16>,
    %29 = vector.extract_strided_slice %1 {offsets = [7, 0], sizes = [1, 125], strides = [1, 1]} : vector<8x175xbf16> to vector<1x125xbf16>
    %c13 = arith.constant 13 : index
    %c0_18 = arith.constant 0 : index
    %30 = vector.load %arg5[%c13, %c0_18] : memref<27x125xbf16, #tpu.memory_space<vmem>>, vector<1x125xbf16>
    tpu.vector_store %arg5[%c13, %c0_18], %29 {strides = array<i32>} : memref<27x125xbf16, #tpu.memory_space<vmem>>, vector<1x125xbf16>,
    %31 = vector.extract_strided_slice %1 {offsets = [6, 1], sizes = [1, 125], strides = [1, 1]} : vector<8x175xbf16> to vector<1x125xbf16>
    %c14 = arith.constant 14 : index
    %c0_19 = arith.constant 0 : index
    %32 = vector.load %arg5[%c14, %c0_19] : memref<27x125xbf16, #tpu.memory_space<vmem>>, vector<1x125xbf16>
    tpu.vector_store %arg5[%c14, %c0_19], %31 {strides = array<i32>} : memref<27x125xbf16, #tpu.memory_space<vmem>>, vector<1x125xbf16>,
    %33 = vector.extract_strided_slice %1 {offsets = [4, 5], sizes = [1, 125], strides = [1, 1]} : vector<8x175xbf16> to vector<1x125xbf16>
    %c15 = arith.constant 15 : index
    %c0_20 = arith.constant 0 : index
    %34 = vector.load %arg5[%c15, %c0_20] : memref<27x125xbf16, #tpu.memory_space<vmem>>, vector<1x125xbf16>
    tpu.vector_store %arg5[%c15, %c0_20], %33 {strides = array<i32>} : memref<27x125xbf16, #tpu.memory_space<vmem>>, vector<1x125xbf16>,
    %35 = vector.extract_strided_slice %1 {offsets = [5, 5], sizes = [1, 125], strides = [1, 1]} : vector<8x175xbf16> to vector<1x125xbf16>
    %c16 = arith.constant 16 : index
    %c0_21 = arith.constant 0 : index
    %36 = vector.load %arg5[%c16, %c0_21] : memref<27x125xbf16, #tpu.memory_space<vmem>>, vector<1x125xbf16>
    tpu.vector_store %arg5[%c16, %c0_21], %35 {strides = array<i32>} : memref<27x125xbf16, #tpu.memory_space<vmem>>, vector<1x125xbf16>,
    %37 = vector.extract_strided_slice %1 {offsets = [4, 6], sizes = [1, 125], strides = [1, 1]} : vector<8x175xbf16> to vector<1x125xbf16>
    %c17 = arith.constant 17 : index
    %c0_22 = arith.constant 0 : index
    %38 = vector.load %arg5[%c17, %c0_22] : memref<27x125xbf16, #tpu.memory_space<vmem>>, vector<1x125xbf16>
    tpu.vector_store %arg5[%c17, %c0_22], %37 {strides = array<i32>} : memref<27x125xbf16, #tpu.memory_space<vmem>>, vector<1x125xbf16>,
    %39 = vector.extract_strided_slice %1 {offsets = [0, 25], sizes = [1, 125], strides = [1, 1]} : vector<8x175xbf16> to vector<1x125xbf16>
    %c18 = arith.constant 18 : index
    %c0_23 = arith.constant 0 : index
    %40 = vector.load %arg5[%c18, %c0_23] : memref<27x125xbf16, #tpu.memory_space<vmem>>, vector<1x125xbf16>
    tpu.vector_store %arg5[%c18, %c0_23], %39 {strides = array<i32>} : memref<27x125xbf16, #tpu.memory_space<vmem>>, vector<1x125xbf16>,
    %41 = vector.extract_strided_slice %1 {offsets = [1, 25], sizes = [1, 125], strides = [1, 1]} : vector<8x175xbf16> to vector<1x125xbf16>
    %c19 = arith.constant 19 : index
    %c0_24 = arith.constant 0 : index
    %42 = vector.load %arg5[%c19, %c0_24] : memref<27x125xbf16, #tpu.memory_space<vmem>>, vector<1x125xbf16>
    tpu.vector_store %arg5[%c19, %c0_24], %41 {strides = array<i32>} : memref<27x125xbf16, #tpu.memory_space<vmem>>, vector<1x125xbf16>,
    %43 = vector.extract_strided_slice %1 {offsets = [0, 26], sizes = [1, 125], strides = [1, 1]} : vector<8x175xbf16> to vector<1x125xbf16>
    %c20 = arith.constant 20 : index
    %c0_25 = arith.constant 0 : index
    %44 = vector.load %arg5[%c20, %c0_25] : memref<27x125xbf16, #tpu.memory_space<vmem>>, vector<1x125xbf16>
    tpu.vector_store %arg5[%c20, %c0_25], %43 {strides = array<i32>} : memref<27x125xbf16, #tpu.memory_space<vmem>>, vector<1x125xbf16>,
    %45 = vector.extract_strided_slice %1 {offsets = [2, 25], sizes = [1, 125], strides = [1, 1]} : vector<8x175xbf16> to vector<1x125xbf16>
    %c21 = arith.constant 21 : index
    %c0_26 = arith.constant 0 : index
    %46 = vector.load %arg5[%c21, %c0_26] : memref<27x125xbf16, #tpu.memory_space<vmem>>, vector<1x125xbf16>
    tpu.vector_store %arg5[%c21, %c0_26], %45 {strides = array<i32>} : memref<27x125xbf16, #tpu.memory_space<vmem>>, vector<1x125xbf16>,
    %47 = vector.extract_strided_slice %1 {offsets = [3, 25], sizes = [1, 125], strides = [1, 1]} : vector<8x175xbf16> to vector<1x125xbf16>
    %c22 = arith.constant 22 : index
    %c0_27 = arith.constant 0 : index
    %48 = vector.load %arg5[%c22, %c0_27] : memref<27x125xbf16, #tpu.memory_space<vmem>>, vector<1x125xbf16>
    tpu.vector_store %arg5[%c22, %c0_27], %47 {strides = array<i32>} : memref<27x125xbf16, #tpu.memory_space<vmem>>, vector<1x125xbf16>,
    %49 = vector.extract_strided_slice %1 {offsets = [2, 26], sizes = [1, 125], strides = [1, 1]} : vector<8x175xbf16> to vector<1x125xbf16>
    %c23 = arith.constant 23 : index
    %c0_28 = arith.constant 0 : index
    %50 = vector.load %arg5[%c23, %c0_28] : memref<27x125xbf16, #tpu.memory_space<vmem>>, vector<1x125xbf16>
    tpu.vector_store %arg5[%c23, %c0_28], %49 {strides = array<i32>} : memref<27x125xbf16, #tpu.memory_space<vmem>>, vector<1x125xbf16>,
    %51 = vector.extract_strided_slice %1 {offsets = [0, 30], sizes = [1, 125], strides = [1, 1]} : vector<8x175xbf16> to vector<1x125xbf16>
    %c24 = arith.constant 24 : index
    %c0_29 = arith.constant 0 : index
    %52 = vector.load %arg5[%c24, %c0_29] : memref<27x125xbf16, #tpu.memory_space<vmem>>, vector<1x125xbf16>
    tpu.vector_store %arg5[%c24, %c0_29], %51 {strides = array<i32>} : memref<27x125xbf16, #tpu.memory_space<vmem>>, vector<1x125xbf16>,
    %53 = vector.extract_strided_slice %1 {offsets = [1, 30], sizes = [1, 125], strides = [1, 1]} : vector<8x175xbf16> to vector<1x125xbf16>
    %c25 = arith.constant 25 : index
    %c0_30 = arith.constant 0 : index
    %54 = vector.load %arg5[%c25, %c0_30] : memref<27x125xbf16, #tpu.memory_space<vmem>>, vector<1x125xbf16>
    tpu.vector_store %arg5[%c25, %c0_30], %53 {strides = array<i32>} : memref<27x125xbf16, #tpu.memory_space<vmem>>, vector<1x125xbf16>,
    %55 = vector.extract_strided_slice %1 {offsets = [0, 31], sizes = [1, 125], strides = [1, 1]} : vector<8x175xbf16> to vector<1x125xbf16>
    %c26 = arith.constant 26 : index
    %c0_31 = arith.constant 0 : index
    %56 = vector.load %arg5[%c26, %c0_31] : memref<27x125xbf16, #tpu.memory_space<vmem>>, vector<1x125xbf16>
    tpu.vector_store %arg5[%c26, %c0_31], %55 {strides = array<i32>} : memref<27x125xbf16, #tpu.memory_space<vmem>>, vector<1x125xbf16>,
    %c0_32 = arith.constant 0 : index
    %c0_33 = arith.constant 0 : index
    %57 = vector.load %arg5[%c0_32, %c0_33] : memref<27x125xbf16, #tpu.memory_space<vmem>>, vector<27x125xbf16>
    %cst = arith.constant dense<0.000000e+00> : vector<8x125xf32>
    %58 = tpu.matmul %2, %57, %cst {dimension_numbers = #tpu.dot_dimension_numbers<[1], [0], [0], [1], [0, 0, 1, 1], [], []>} : vector<8x27xbf16>, vector<27x125xbf16>, vector<8x125xf32> -> vector<8x125xf32>
    %c0_34 = arith.constant 0 : index
    %c0_35 = arith.constant 0 : index
    %c0_36 = arith.constant 0 : index
    %59 = vector.load %arg3[%c0_34, %c0_35, %c0_36] : memref<1x8x1xf32, #tpu.memory_space<vmem>>, vector<1x8x1xf32>
    %60 = vector.shape_cast %59 : vector<1x8x1xf32> to vector<8x1xf32>
    %61 = vector.broadcast %60 : vector<8x1xf32> to vector<8x125xf32>
    %62 = arith.addf %58, %61 : vector<8x125xf32>
    %cst_37 = arith.constant 0.000000e+00 : f32
    %63 = vector.broadcast %cst_37 : f32 to vector<8x125xf32>
    %64 = arith.cmpf oge, %62, %63 : vector<8x125xf32>
    %cst_38 = arith.constant 2.000000e-01 : f32
    %65 = vector.broadcast %cst_38 : f32 to vector<8x125xf32>
    %66 = arith.mulf %65, %62 : vector<8x125xf32>
    %67 = arith.select %64, %62, %66 : vector<8x125xi1>, vector<8x125xf32>
    %68 = arith.truncf %67 : vector<8x125xf32> to vector<8x125xbf16>
    %c0_39 = arith.constant 0 : index
    %c0_40 = arith.constant 0 : index
    %c0_41 = arith.constant 0 : index
    %69 = vector.load %arg4[%c0_39, %c0_40, %c0_41] : memref<1x8x125xbf16, #tpu.memory_space<vmem>>, vector<1x8x125xbf16>
    %70 = vector.shape_cast %69 : vector<1x8x125xbf16> to vector<8x125xbf16>
    %71 = vector.shape_cast %68 : vector<8x125xbf16> to vector<1x8x125xbf16>
    tpu.vector_store %arg4[%c0_39, %c0_40, %c0_41], %71 {strides = array<i32>} : memref<1x8x125xbf16, #tpu.memory_space<vmem>>, vector<1x8x125xbf16>,
    return
  }
  func.func @transform_0(%arg0: i32) -> (i32, i32, i32) {
    %c0_i32 = arith.constant 0 : i32
    %c0_i32_0 = arith.constant 0 : i32
    %c0_i32_1 = arith.constant 0 : i32
    return %arg0, %c0_i32, %c0_i32_0 : i32, i32, i32
  }
  func.func @transform_1(%arg0: i32) -> (i32, i32) {
    %c0_i32 = arith.constant 0 : i32
    %c0_i32_0 = arith.constant 0 : i32
    %c0_i32_1 = arith.constant 0 : i32
    return %c0_i32, %c0_i32_0 : i32, i32
  }
  func.func @transform_2(%arg0: i32) -> (i32, i32, i32) {
    %c0_i32 = arith.constant 0 : i32
    %c0_i32_0 = arith.constant 0 : i32
    %c0_i32_1 = arith.constant 0 : i32
    return %arg0, %c0_i32, %c0_i32_0 : i32, i32, i32
  }
  func.func @transform_3(%arg0: i32) -> (i32, i32, i32) {
    %c0_i32 = arith.constant 0 : i32
    %c0_i32_0 = arith.constant 0 : i32
    %c0_i32_1 = arith.constant 0 : i32
    return %arg0, %c0_i32, %c0_i32_0 : i32, i32, i32
  }
}

</mosaic_0001>

<llo_original>
// kernel: tpu_custom_call.1
$region0: #{tpu_custom_call.1}
  #allocation0 [shape = 'u32[]', space=smem, size = 0x4, offset = 0x4, fixed_abs, tag = 'smem constant byte address 0x4 - core index']
  #allocation1 [shape = 'u32[144,128]{1,0:T(1,128)}', space=vmem, size = 0x12000, scoped, tag = 'internal scratch']
  #allocation2 [shape = 'bf16[27,125]{1,0:T(8,128)(2,1)}', space=vmem, size = 0x2000, scoped, tag = 'scratch operand']
  %s0 = inlined_call_operand.vmem [shape: bf16[2,8,175], index: 0, kind: input, shape index: {}]
  %s1 = inlined_call_operand.vmem [shape: bf16[8,27], index: 1, kind: input, shape index: {}]
  %s2 = inlined_call_operand.vmem [shape: f32[2,8,1], index: 2, kind: input, shape index: {}]
  %s3 = inlined_call_operand.hbm [shape: bf16[2,8,125], index: 3, kind: output, shape index: {}]
  %s4 = sld [smem:[#allocation0]]
  $region45: #{tpu_custom_call.1} parent=0
    _
  %s6 = ssub.s32 1, %s4
  %s7 = scalar_select 0, %s6, %s4
  $region1: #{tpu_custom_call.1} parent=0
    #allocation3 [shape = 'u8[4096]{0}', space=vmem, size = 0x1000, scoped, tag = 'output window, operand 0']
    #allocation4 [shape = 's32[2]{0}', space=sflag, size = 0x8, scoped, tag = 'scoped memory for tpu_custom_call.1']
    %8 = vsyncpa [#allocation4], 0
    %s9 = scalar_lea.sflag [#allocation4], 1
    %10 = vsyncpa %s9, 0
    loop: start=0, step=1, limit=4
    $region2: #{tpu_custom_call.1} parent=1 // loop_pre_header
      _
    $region3: #{tpu_custom_call.1} parent=1 // loop_header
      %s12 = sphi 0, %s16
      %p13 = scmp.ge.s32.totalorder %s12, 4
      %s22 = sphi 0, %s24
      %s25 = sphi 0, %s22
      %s26 = sphi 0, %s25
      %s42 = sphi 0, %s26
      %s46 = sphi 0, %s46
      %s48 = sphi 0, %s46
      %s49 = sphi 0, %s48
      %s63 = sphi 0, %s49
      %s69 = sphi 0, %s71
      %s72 = sphi 0, %s69
      %s73 = sphi 0, %s72
      %s89 = sphi 0, %s73
      %s95 = sphi 0, %s97
      %s98 = sphi 0, %s95
      %s99 = sphi 0, %s98
      %s115 = sphi 0, %s99
    $region4: #{tpu_custom_call.1} parent=1 // loop_header_branch
      %15 = sbr.rel (%p13) target = $region8
    $region5: #{tpu_custom_call.1} parent=1 // loop_body
      %s17 = ssub.s32 %s12, 1
      %s18 = ssub.s32 %s12, 2
      %s19 = sadd.s32 %s12, 1
      %s20 = ssub.s32 %s12, %s19
      %p21 = scmp.eq.s32.totalorder %s20, 0
      %s23 = sadd.s32 %s22, 1
      %s24 = scalar_select %p21, %s22, %s23
      %p27 = pneg %p21
      %p28 = scmp.eq.s32.totalorder %s12, 1
      %p29 = por %p27, %p28
      %p30 = scmp.ne.s32.totalorder %s22, %s25
      %p31 = scmp.eq.s32.totalorder %s12, 0
      %p32 = por %p30, %p31
      %p33 = scmp.ne.s32.totalorder %s22, %s25
      %p34 = scmp.eq.s32.totalorder %s17, 1
      %p35 = por %p33, %p34
      %p36 = scmp.ne.s32.totalorder %s25, %s26
      %p37 = scmp.eq.s32.totalorder %s17, 0
      %p38 = por %p36, %p37
      %p39 = scmp.ne.s32.totalorder %s25, %s26
      %p40 = scmp.eq.s32.totalorder %s18, 1
      %p41 = por %p39, %p40
      %p43 = scmp.ne.s32.totalorder %s26, %s42
      %p44 = scmp.eq.s32.totalorder %s18, 0
      %p45 = por %p43, %p44
      %s47 = sadd.s32 %s46, 1
      %p50 = scmp.eq.s32.totalorder %s12, 1
      %p51 = scmp.ne.s32.totalorder %s46, %s48
      %p52 = scmp.eq.s32.totalorder %s12, 0
      %p53 = por %p51, %p52
      %p54 = scmp.ne.s32.totalorder %s46, %s48
      %p55 = scmp.eq.s32.totalorder %s17, 1
      %p56 = por %p54, %p55
      %p57 = scmp.ne.s32.totalorder %s48, %s49
      %p58 = scmp.eq.s32.totalorder %s17, 0
      %p59 = por %p57, %p58
      %p60 = scmp.ne.s32.totalorder %s48, %s49
      %p61 = scmp.eq.s32.totalorder %s18, 1
      %p62 = por %p60, %p61
      %p64 = scmp.ne.s32.totalorder %s49, %s63
      %p65 = scmp.eq.s32.totalorder %s18, 0
      %p66 = por %p64, %p65
      %s67 = ssub.s32 %s12, %s19
      %p68 = scmp.eq.s32.totalorder %s67, 0
      %s70 = sadd.s32 %s69, 1
      %s71 = scalar_select %p68, %s69, %s70
      %p74 = pneg %p68
      %p75 = scmp.eq.s32.totalorder %s12, 1
      %p76 = por %p74, %p75
      %p77 = scmp.ne.s32.totalorder %s69, %s72
      %p78 = scmp.eq.s32.totalorder %s12, 0
      %p79 = por %p77, %p78
      %p80 = scmp.ne.s32.totalorder %s69, %s72
      %p81 = scmp.eq.s32.totalorder %s17, 1
      %p82 = por %p80, %p81
      %p83 = scmp.ne.s32.totalorder %s72, %s73
      %p84 = scmp.eq.s32.totalorder %s17, 0
      %p85 = por %p83, %p84
      %p86 = scmp.ne.s32.totalorder %s72, %s73
      %p87 = scmp.eq.s32.totalorder %s18, 1
      %p88 = por %p86, %p87
      %p90 = scmp.ne.s32.totalorder %s73, %s89
      %p91 = scmp.eq.s32.totalorder %s18, 0
      %p92 = por %p90, %p91
      %s93 = ssub.s32 %s12, %s19
      %p94 = scmp.eq.s32.totalorder %s93, 0
      %s96 = sadd.s32 %s95, 1
      %s97 = scalar_select %p94, %s95, %s96
      %p100 = pneg %p94
      %p101 = scmp.eq.s32.totalorder %s12, 1
      %p102 = por %p100, %p101
      %p103 = scmp.ne.s32.totalorder %s95, %s98
      %p104 = scmp.eq.s32.totalorder %s12, 0
      %p105 = por %p103, %p104
      %p106 = scmp.ne.s32.totalorder %s95, %s98
      %p107 = scmp.eq.s32.totalorder %s17, 1
      %p108 = por %p106, %p107
      %p109 = scmp.ne.s32.totalorder %s98, %s99
      %p110 = scmp.eq.s32.totalorder %s17, 0
      %p111 = por %p109, %p110
      %p112 = scmp.ne.s32.totalorder %s98, %s99
      %p113 = scmp.eq.s32.totalorder %s18, 1
      %p114 = por %p112, %p113
      %p116 = scmp.ne.s32.totalorder %s99, %s115
      %p117 = scmp.eq.s32.totalorder %s18, 0
      %p118 = por %p116, %p117
      %p119 = scmp.le.s32.totalorder 1, %s12
      %p120 = scmp.lt.s32.totalorder %s12, 3
      %p121 = pnand %p119, %p120
      %p122 = pneg %p121
      // Predicated region
      $region9: #{tpu_custom_call.1} parent=5 // pred_check
        _
      $region10: #{tpu_custom_call.1} parent=5 // pred_check_branch
        %124 = sbr.rel (%p121) target = $region12
      $region11: #{tpu_custom_call.1} parent=5 // pred_region
        %s125 = ssub.s32 %s12, 1
        // Predicated region
        $region13: #{tpu_custom_call.1} parent=11 // pred_check
          %p126 = pneg %p59
        $region14: #{tpu_custom_call.1} parent=11 // pred_check_branch
          %128 = sbr.rel (%p126) target = $region16
        $region15: #{tpu_custom_call.1} parent=11 // pred_region
          _
        $region16: #{tpu_custom_call.1} parent=11 // pred_fallthru
          _
      $region12: #{tpu_custom_call.1} parent=5 // pred_fallthru
        _
      %p129 = scmp.lt.s32.totalorder %s12, 2
      // Predicated region
      $region17: #{tpu_custom_call.1} parent=5 // pred_check
        %p130 = pneg %p129
      $region18: #{tpu_custom_call.1} parent=5 // pred_check_branch
        %132 = sbr.rel (%p130) target = $region20
      $region19: #{tpu_custom_call.1} parent=5 // pred_region
        // Predicated region
        $region21: #{tpu_custom_call.1} parent=19 // pred_check
          %p133 = pneg %p32
        $region22: #{tpu_custom_call.1} parent=19 // pred_check_branch
          %135 = sbr.rel (%p133) target = $region24
        $region23: #{tpu_custom_call.1} parent=19 // pred_region
          %p136 = scmp.lt.s32.totalorder %s12, 1
          %s137 = scalar_select %p136, %s12, 1
          %s138 = smul.addr %s137, 2
          %s139 = smul.addr %s138, 4
          %s140 = scalar_lea.vmem %s0, %s139
        $region24: #{tpu_custom_call.1} parent=19 // pred_fallthru
          _
        // Predicated region
        $region25: #{tpu_custom_call.1} parent=19 // pred_check
          %p141 = pneg %p79
        $region26: #{tpu_custom_call.1} parent=19 // pred_check_branch
          %143 = sbr.rel (%p141) target = $region28
        $region27: #{tpu_custom_call.1} parent=19 // pred_region
          %p144 = scmp.lt.s32.totalorder %s12, 1
          %s145 = scalar_select %p144, %s12, 1
          %s146 = smul.addr %s145, 8
          %s147 = scalar_lea.vmem %s2, %s146
        $region28: #{tpu_custom_call.1} parent=19 // pred_fallthru
          _
      $region20: #{tpu_custom_call.1} parent=5 // pred_fallthru
        _
      %p148 = scmp.le.s32.totalorder 1, %s12
      %p149 = scmp.lt.s32.totalorder %s12, 3
      %p150 = pnand %p148, %p149
      %p151 = pneg %p150
      // Predicated region
      $region29: #{tpu_custom_call.1} parent=5 // pred_check
        _
      $region30: #{tpu_custom_call.1} parent=5 // pred_check_branch
        %153 = sbr.rel (%p150) target = $region32
      $region31: #{tpu_custom_call.1} parent=5 // pred_region
        %s154 = ssub.s32 %s12, 1
        %p155 = scmp.lt.s32.totalorder %s17, 1
        %s156 = scalar_select %p155, %s17, 1
        %s157 = smul.addr %s156, 2
        %s158 = smul.addr %s157, 4
        %s159 = scalar_lea.vmem %s0, %s158
        %p160 = pneg %p38
        %p161 = pneg %p35
        %p162 = pneg %p59
        %p163 = pneg %p56
        %p164 = scmp.lt.s32.totalorder %s17, 1
        %s165 = scalar_select %p164, %s17, 1
        %s166 = smul.addr %s165, 8
        %s167 = scalar_lea.vmem %s2, %s166
        %p168 = pneg %p85
        %p169 = pneg %p82
        %p170 = pneg %p111
        %p171 = pneg %p108
        %s172 = sand.u32 %s98, 1
        %s173 = scalar_lea.sflag [#allocation4], %s172
        %s174 = sand.u32 %s98, 1
        %s175 = smul.addr %s174, 4
        %s176 = scalar_lea.vmem [#allocation3], %s175
        %p177 = scmp.lt.s32.totalorder %s17, 1
        %s178 = scalar_select %p177, %s17, 1
        %s179 = smul.addr %s178, 2
        %s180 = smul.addr %s179, 4
        %s181 = scalar_lea.vmem %s0, %s180
        %p182 = scmp.lt.s32.totalorder %s17, 1
        %s183 = scalar_select %p182, %s17, 1
        %s184 = smul.addr %s183, 8
        %s185 = scalar_lea.vmem %s2, %s184
        %v187 = vld [vmem:[%s181] sm:$0xff]
        %v188 = vld [vmem:[%s1] sm:$0xf]
        %vm189 = vcmask 1015808
        %vm190 = vsmask.f32 256
        %vm191 = vmand %vm189, %vm190
        %v192 = vld [vmem:[#allocation2] sm:$0x1]
        %v193 = vsel %vm191, %v187, %v192
        %194 = vst [vmem:[#allocation2] sm:$0x1] %v193
        %vm195 = vsmask.f32 7938
        %vm196 = vmand %vm189, %vm195
        %v197 = vld [vmem:[#allocation2] sm:$0x1]
        %v198 = vsel %vm196, %v187, %v197
        %199 = vst [vmem:[#allocation2] sm:$0x1] %v198
        %v201 = vrot.slane %v187, 7
        %202 = vrot.lane.b32.xlu0 %v201, 127
        %v203 = vpop.permute.xlu0 %202
        %vm205 = vcmask 1016833
        %vm206 = vsmask.f32 1280
        %vm207 = vmand %vm205, %vm206
        %v208 = vld [vmem:[#allocation2] sm:$0x2]
        %v209 = vsel %vm207, %v203, %v208
        %210 = vst [vmem:[#allocation2] sm:$0x2] %v209
        %v212 = vshll.u32 %v187, 16
        %vm215 = vsmask.f32 7942
        %vm216 = vmand %vm205, %vm215
        %v217 = vld [vmem:[#allocation2] sm:$0x2]
        %v218 = vsel %vm216, %v212, %v217
        %219 = vst [vmem:[#allocation2] sm:$0x2] %v218
        %v220 = vshrl.u32 %v187, 16
        %v222 = vrot.slane %v220, 7
        %vm224 = vcmask 1017858
        %vm225 = vsmask.f32 2304
        %vm226 = vmand %vm224, %vm225
        %v227 = vld [vmem:[#allocation2] sm:$0x4]
        %v228 = vsel %vm226, %v222, %v227
        %229 = vst [vmem:[#allocation2] sm:$0x4] %v228
        %v230 = vrot.slane %v212, 7
        %231 = vrot.lane.b32.xlu0 %v230, 127
        %v232 = vpop.permute.xlu0 %231
        %vm234 = vsmask.f32 7946
        %vm235 = vmand %vm224, %vm234
        %v236 = vld [vmem:[#allocation2] sm:$0x4]
        %v237 = vsel %vm235, %v232, %v236
        %238 = vst [vmem:[#allocation2] sm:$0x4] %v237
        %v239 = vrot.slane %v187, 5
        %240 = vrot.lane.b32.xlu0 %v239, 123
        %v241 = vpop.permute.xlu0 %240
        %v242 = vrot.slane %v241, 4
        %vm243 = vcmask 1006592
        %v244 = vsel %vm243, %v241, %v242
        %vm246 = vcmask 1018883
        %vm247 = vsmask.f32 3328
        %vm248 = vmand %vm246, %vm247
        %v249 = vld [vmem:[#allocation2] sm:$0x8]
        %v250 = vsel %vm248, %v244, %v249
        %251 = vst [vmem:[#allocation2] sm:$0x8] %v250
        %vm252 = vsmask.f32 7950
        %vm253 = vmand %vm246, %vm252
        %v254 = vld [vmem:[#allocation2] sm:$0x8]
        %v255 = vsel %vm253, %v244, %v254
        %256 = vst [vmem:[#allocation2] sm:$0x8] %v255
        %257 = vrot.lane.b32.xlu0 %v187, 122
        %v258 = vpop.permute.xlu0 %257
        %v259 = vrot.slane %v258, 4
        %vm260 = vcmask 998400
        %v261 = vsel %vm260, %v258, %v259
        %v263 = vld [vmem:[#allocation2 + $0x4] sm:$0x1]
        %v264 = vsel %vm191, %v261, %v263
        %265 = vst [vmem:[#allocation2 + $0x4] sm:$0x1] %v264
        %v266 = vrot.slane %v212, 6
        %v267 = vrot.slane %v266, 4
        %v269 = vld [vmem:[#allocation2 + $0x4] sm:$0x1]
        %v270 = vsel %vm196, %v267, %v269
        %271 = vst [vmem:[#allocation2 + $0x4] sm:$0x1] %v270
        %v272 = vrot.slane %v220, 5
        %v273 = vrot.slane %v272, 4
        %v275 = vld [vmem:[#allocation2 + $0x4] sm:$0x2]
        %v276 = vsel %vm207, %v273, %v275
        %277 = vst [vmem:[#allocation2 + $0x4] sm:$0x2] %v276
        %v278 = vrot.slane %v212, 5
        %v279 = vrot.slane %v278, 4
        %280 = vrot.lane.b32.xlu0 %v279, 127
        %v281 = vpop.permute.xlu0 %280
        %v283 = vld [vmem:[#allocation2 + $0x4] sm:$0x2]
        %v284 = vsel %vm216, %v281, %v283
        %285 = vst [vmem:[#allocation2 + $0x4] sm:$0x2] %v284
        %v286 = vrot.slane %v239, 4
        %v288 = vld [vmem:[#allocation2 + $0x4] sm:$0x4]
        %v289 = vsel %vm226, %v286, %v288
        %290 = vst [vmem:[#allocation2 + $0x4] sm:$0x4] %v289
        %v291 = vld [vmem:[#allocation2 + $0x4] sm:$0x4]
        %v292 = vsel %vm235, %v286, %v291
        %293 = vst [vmem:[#allocation2 + $0x4] sm:$0x4] %v292
        %294 = vrot.lane.b32.xlu0 %v187, 127
        %v295 = vpop.permute.xlu0 %294
        %v297 = vld [vmem:[#allocation2 + $0x4] sm:$0x8]
        %v298 = vsel %vm248, %v295, %v297
        %299 = vst [vmem:[#allocation2 + $0x4] sm:$0x8] %v298
        %300 = vrot.lane.b32.xlu0 %v230, 123
        %v301 = vpop.permute.xlu0 %300
        %v302 = vrot.slane %v301, 4
        %v303 = vsel %vm243, %v301, %v302
        %v305 = vld [vmem:[#allocation2 + $0x4] sm:$0x8]
        %v306 = vsel %vm253, %v303, %v305
        %307 = vst [vmem:[#allocation2 + $0x4] sm:$0x8] %v306
        %v308 = vrot.slane %v220, 6
        %v309 = vrot.slane %v308, 4
        %310 = vrot.lane.b32.xlu0 %v309, 123
        %v311 = vpop.permute.xlu0 %310
        %v312 = vrot.slane %v311, 4
        %v313 = vsel %vm243, %v311, %v312
        %v315 = vld [vmem:[#allocation2 + $0x8] sm:$0x1]
        %v316 = vsel %vm191, %v313, %v315
        %317 = vst [vmem:[#allocation2 + $0x8] sm:$0x1] %v316
        %318 = vrot.lane.b32.xlu0 %v267, 122
        %v319 = vpop.permute.xlu0 %318
        %v320 = vrot.slane %v319, 4
        %v321 = vsel %vm260, %v319, %v320
        %v323 = vld [vmem:[#allocation2 + $0x8] sm:$0x1]
        %v324 = vsel %vm196, %v321, %v323
        %325 = vst [vmem:[#allocation2 + $0x8] sm:$0x1] %v324
        %326 = vrot.lane.b32.xlu0 %v201, 103
        %v327 = vpop.permute.xlu0 %326
        %v328 = vrot.slane %v327, 4
        %vm329 = vcmask 842752
        %v330 = vsel %vm329, %v327, %v328
        %v332 = vld [vmem:[#allocation2 + $0x8] sm:$0x2]
        %v333 = vsel %vm207, %v330, %v332
        %334 = vst [vmem:[#allocation2 + $0x8] sm:$0x2] %v333
        %v335 = vld [vmem:[#allocation2 + $0x8] sm:$0x2]
        %v336 = vsel %vm216, %v330, %v335
        %337 = vst [vmem:[#allocation2 + $0x8] sm:$0x2] %v336
        %v338 = vrot.slane %v187, 6
        %339 = vrot.lane.b32.xlu0 %v338, 102
        %v340 = vpop.permute.xlu0 %339
        %v341 = vrot.slane %v340, 4
        %vm342 = vcmask 834560
        %v343 = vsel %vm342, %v340, %v341
        %v345 = vld [vmem:[#allocation2 + $0x8] sm:$0x4]
        %v346 = vsel %vm226, %v343, %v345
        %347 = vst [vmem:[#allocation2 + $0x8] sm:$0x4] %v346
        %348 = vrot.lane.b32.xlu0 %v230, 103
        %v349 = vpop.permute.xlu0 %348
        %v350 = vrot.slane %v349, 4
        %v351 = vsel %vm329, %v349, %v350
        %v353 = vld [vmem:[#allocation2 + $0x8] sm:$0x4]
        %v354 = vsel %vm235, %v351, %v353
        %355 = vst [vmem:[#allocation2 + $0x8] sm:$0x4] %v354
        %356 = vrot.lane.b32.xlu0 %v308, 103
        %v357 = vpop.permute.xlu0 %356
        %v358 = vrot.slane %v357, 4
        %v359 = vsel %vm329, %v357, %v358
        %v361 = vld [vmem:[#allocation2 + $0x8] sm:$0x8]
        %v362 = vsel %vm248, %v359, %v361
        %363 = vst [vmem:[#allocation2 + $0x8] sm:$0x8] %v362
        %364 = vrot.lane.b32.xlu0 %v266, 102
        %v365 = vpop.permute.xlu0 %364
        %v366 = vrot.slane %v365, 4
        %v367 = vsel %vm342, %v365, %v366
        %v369 = vld [vmem:[#allocation2 + $0x8] sm:$0x8]
        %v370 = vsel %vm253, %v367, %v369
        %371 = vst [vmem:[#allocation2 + $0x8] sm:$0x8] %v370
        %372 = vrot.lane.b32.xlu0 %v187, 98
        %v373 = vpop.permute.xlu0 %372
        %v374 = vrot.slane %v373, 4
        %vm375 = vcmask 801792
        %v376 = vsel %vm375, %v373, %v374
        %v378 = vld [vmem:[#allocation2 + $0xc] sm:$0x1]
        %v379 = vsel %vm191, %v376, %v378
        %380 = vst [vmem:[#allocation2 + $0xc] sm:$0x1] %v379
        %v381 = vld [vmem:[#allocation2 + $0xc] sm:$0x1]
        %v382 = vsel %vm196, %v376, %v381
        %383 = vst [vmem:[#allocation2 + $0xc] sm:$0x1] %v382
        %384 = vrot.lane.b32.xlu0 %v201, 97
        %v385 = vpop.permute.xlu0 %384
        %v386 = vrot.slane %v385, 4
        %vm387 = vcmask 793600
        %v388 = vsel %vm387, %v385, %v386
        %v390 = vld [vmem:[#allocation2 + $0xc] sm:$0x2]
        %v391 = vsel %vm207, %v388, %v390
        %392 = vst [vmem:[#allocation2 + $0xc] sm:$0x2] %v391
        %v393 = vld [vmem:[#allocation2] sm:$0xf]
        %v394 = vld [vmem:[#allocation2 + $0x4] sm:$0xf]
        %v395 = vld [vmem:[#allocation2 + $0x8] sm:$0xf]
        %v396 = vld [vmem:[#allocation2 + $0xc] sm:$0x3]
        %v397 = vld [vmem:[%s185] sm:$0xff]
        %399 = vset.pattern.permute.xlu0 0
        %400 = vperm.xlu0 %399, %v397
        %v401 = vpop.permute.xlu0 %400
        %v407 = vunpack.c.l.b16 %v393
        %v408 = vunpack.c.l.b16 %v394
        %v409 = vunpack.c.l.b16 %v395
        %v410 = vunpack.c.l.b16 %v396
        %v411 = vpack.c.b16 %v408, %v407
        %v412 = vpack.c.b16 %v410, %v409
        %vm414 = vcmask 220160
        %v416 = vsel %vm414, %v188, 0
        %vm418 = vcmask 1044480
        %vm419 = vcmask 1045504
        %v420 = vsel %vm418, 4294967295, 65535
        %v421 = vsel %vm419, %v420, 0
        %v423 = vand.u32 %v412, %v421
        %425 = vmatprep.subr.bf16.mxu0 0
        %426 = vmatpush1.bf16.msra.mxu0 %v411
        %427 = vmatprep.subr.bf16.mxu0 0
        %428 = vmatpush1.bf16.msra.mxu0 %v423
        %429 = vmatprep.subr.bf16.mxu0 0
        %430 = vmatpush1.bf16.msra.mxu0 0
        %431 = vmatprep.subr.bf16.mxu0 0
        %432 = vmatpush1.bf16.msra.mxu0 0
        %433 = vmatprep.subr.bf16.mxu0 0
        %434 = vmatpush1.bf16.msra.mxu0 0
        %435 = vmatprep.subr.bf16.mxu0 0
        %436 = vmatpush1.bf16.msra.mxu0 0
        %437 = vmatprep.subr.bf16.mxu0 0
        %438 = vmatpush1.bf16.msra.mxu0 0
        %439 = vmatprep.subr.bf16.mxu0 0
        %440 = vmatpush1.bf16.msra.mxu0 0
        %441 = vmatprep.subr.bf16.mxu0 0
        %442 = vmatpush1.bf16.msra.mxu0 0
        %443 = vmatprep.subr.bf16.mxu0 0
        %444 = vmatpush1.bf16.msra.mxu0 0
        %445 = vmatprep.subr.bf16.mxu0 0
        %446 = vmatpush1.bf16.msra.mxu0 0
        %447 = vmatprep.subr.bf16.mxu0 0
        %448 = vmatpush1.bf16.msra.mxu0 0
        %449 = vmatprep.subr.bf16.mxu0 0
        %450 = vmatpush1.bf16.msra.mxu0 0
        %451 = vmatprep.subr.bf16.mxu0 0
        %452 = vmatpush1.bf16.msra.mxu0 0
        %453 = vmatprep.subr.bf16.mxu0 0
        %454 = vmatpush1.bf16.msra.mxu0 0
        %455 = vmatprep.subr.bf16.mxu0 0
        %456 = vmatpush1.bf16.msra.mxu0 0
        %457 = vmatprep.mubr.bf16.mxu0 0
        %458 = vmatmul.mubr.bf16.gmra.mrb[0].mxu0 %v416
        %v459 = vpop.f32.mrb[0].mxu0
        %v460 = vadd.f32 %v401, %v459
        %v461 = vpop.f32.mrb[0].mxu0
        %v462 = vpop.f32.mrb[0].mxu0
        %v463 = vpop.f32.mrb[0].mxu0
        %464 = vdwg.mxu0
        %vm465 = vcmp.ge.f32.partialorder %v460, 0.0
        %v466 = vmul.f32 %v460, 0.2
        %v467 = vsel %vm465, %v460, %v466
        %v468 = vpack.c.bf16 %v467, %v467
        %vm469 = vcmask 1018880
        %470 = vst.msk [vmem:[%s176] sm:$0xf] %vm469, %v468
        %s471 = sand.u32 %s98, 1
        %s472 = scalar_lea.sflag [#allocation4], %s471
        %s473 = sand.u32 %s98, 1
        %s474 = smul.addr %s473, 4
        %s475 = scalar_lea.vmem [#allocation3], %s474
        // Predicated region
        $region33: #{tpu_custom_call.1} parent=31 // pred_check
          %p476 = pneg %p108
        $region34: #{tpu_custom_call.1} parent=31 // pred_check_branch
          %478 = sbr.rel (%p476) target = $region36
        $region35: #{tpu_custom_call.1} parent=31 // pred_region
          %s480 = ssub.s32 64, 64
          %481 = vsyncadd %s472, %s480
          %s482 = smul.addr %s17, 64
          %s483 = scalar_lea.hbm %s3, %s482
          %s485 = sshll.u32 %s475, 4
          %s486 = int_to_ptr.vmem [resolvable:$true] %s485
          %488 = dma.vmem_to_hbm [thread:$0]  %s486, 64, %s483, %s472
        $region36: #{tpu_custom_call.1} parent=31 // pred_fallthru
          _
      $region32: #{tpu_custom_call.1} parent=5 // pred_fallthru
        _
      %p489 = scmp.le.s32.totalorder 2, %s12
      // Predicated region
      $region37: #{tpu_custom_call.1} parent=5 // pred_check
        %p490 = pneg %p489
      $region38: #{tpu_custom_call.1} parent=5 // pred_check_branch
        %492 = sbr.rel (%p490) target = $region40
      $region39: #{tpu_custom_call.1} parent=5 // pred_region
        %s493 = ssub.s32 %s12, 2
        // Predicated region
        $region41: #{tpu_custom_call.1} parent=39 // pred_check
          %p494 = pneg %p114
        $region42: #{tpu_custom_call.1} parent=39 // pred_check_branch
          %496 = sbr.rel (%p494) target = $region44
        $region43: #{tpu_custom_call.1} parent=39 // pred_region
          %s497 = sand.u32 %s99, 1
          %s498 = scalar_lea.sflag [#allocation4], %s497
          %s499 = sand.u32 %s99, 1
          %s500 = smul.addr %s499, 4
          %s501 = scalar_lea.vmem [#allocation3], %s500
          %502 = dma.done %s498, 64
        $region44: #{tpu_custom_call.1} parent=39 // pred_fallthru
          _
      $region40: #{tpu_custom_call.1} parent=5 // pred_fallthru
        _
    $region6: #{tpu_custom_call.1} parent=1 // loop_footer
      %s16 = sadd.s32 1, %s12
    $region7: #{tpu_custom_call.1} parent=1 // loop_footer_branch
      %11 = sbr.rel target = $region3
    $region8: #{tpu_custom_call.1} parent=1 // loop_exit
      _
    %503 = vsyncpa [#allocation4], 1
    %s504 = scalar_lea.sflag [#allocation4], 1
    %505 = vsyncpa %s504, 1

</llo_original>
